<compile_context>
chip_gen: v5e
topology: v5e:2x2
jax: 0.10.0
libtpu: 0.0.40
codegen_flags: <defaults>
</compile_context>

<pallas_src>
import functools

import jax
import jax.numpy as jnp
from jax.experimental import pallas as pl
from jax.experimental.pallas import tpu as pltpu

BN_EPS = 1e-5


# ----------------------------------------------------------------------------- VMEM budgeting


def _round_up(v, m):
    return (v + m - 1) // m * m


def _padded_vmem_bytes(shape, dtype):
    s = list(shape)
    if len(s) >= 1:
        s[-1] = _round_up(s[-1], 128)
    if len(s) >= 2:
        s[-2] = _round_up(s[-2], 8)
    n = 1
    for d in s:
        n *= d
    return n * jnp.dtype(dtype).itemsize


def _vmem_capacity_bytes():
    try:
        return int(pltpu.get_tpu_info().vmem_capacity_bytes)
    except Exception:
        return 64 << 20  # conservative fallback: v7x per-TC VMEM


def _block_bytes(B, D, tn, x_dtype, w_dtype, out_dtype, weight_buffers):
    """Total VMEM footprint of all pipelined blocks at feature-tile width tn."""
    return (
        weight_buffers * _padded_vmem_bytes((D, tn), w_dtype)   # weight tile (dominant stream)
        + 2 * _padded_vmem_bytes((B, D), x_dtype)               # x (double-buffered)
        + 2 * _padded_vmem_bytes((B, tn), out_dtype)            # output tile
        + 2 * _padded_vmem_bytes((3, tn), jnp.float32)          # bias / gamma / beta
        + 2 * _padded_vmem_bytes((B, 1), jnp.float32)           # gate
    )


def _pick_feature_tile(B, D, x_dtype, w_dtype, out_dtype, capacity_bytes, headroom=8 << 20):
    """Largest multiple-of-128 divisor of D whose full double-buffered working set fits VMEM.

    Returns (tn, weight_buffer_count)."""
    budget = max(capacity_bytes - headroom, 16 << 20)
    cands = [t for t in range(128, D + 1, 128) if D % t == 0]
    if not cands:
        # TODO(synk): D not a multiple of 128 -> not lane-dense; pad the feature dim upstream.
        return D, 2
    fitting = [t for t in cands
               if _block_bytes(B, D, t, x_dtype, w_dtype, out_dtype, 2) <= budget]
    tn = max(fitting) if fitting else min(cands)
    # Deepen the weight pipeline on 128-MiB parts (v5e/v6e) when a 3rd buffer still fits.
    weight_buffers = 2
    if (capacity_bytes >= (96 << 20)
            and _block_bytes(B, D, tn, x_dtype, w_dtype, out_dtype, 3) <= budget):
        weight_buffers = 3
    return tn, weight_buffers


# ----------------------------------------------------------------------------- kernel bodies


def _expert_tile(x_ref, w_ref, p_ref, gate_ref, out_dtype):
    """One (expert, feature-tile) block: Linear -> QuickGELU -> BN -> gate.  Returns [B, tn]."""
    x = x_ref[0]           # [B, D]   (matmul dtype, bf16 by default)
    w = w_ref[0, 0]        # [D, tn]  (matmul dtype)

    # Linear on the MXU in native operand dtype with f32 accumulation.
    h = jnp.dot(x, w, preferred_element_type=jnp.float32)          # [B, tn] f32

    p = p_ref[0]           # [3, tn] f32: bias / gamma / beta
    h = h + p[0:1, :]

    # QuickGELU: h * sigmoid(1.702 * h)   (sigmoid -> EUP slot)
    g = h * jax.nn.sigmoid(1.702 * h)

    # BatchNorm1d (training-mode forward), two-pass stats, folded affine.
    mean = jnp.mean(g, axis=0, keepdims=True)                      # [1, tn]
    centered = g - mean
    var = jnp.mean(centered * centered, axis=0, keepdims=True)     # biased variance
    scale = p[1:2, :] * jax.lax.rsqrt(var + BN_EPS)                # gamma / sqrt(var + eps)

    gate = gate_ref[0]     # [B, 1] f32, broadcasts over features
    return ((centered * scale + p[2:3, :]) * gate).astype(out_dtype)


def expert_head_kernel_bed(x_ref, w_ref, p_ref, gate_ref, out_ref):
    # Lane-dense path: output laid out as [B, E*D]; this block is [B, tn].
    out_ref[...] = _expert_tile(x_ref, w_ref, p_ref, gate_ref, out_ref.dtype)


def expert_head_kernel_ebd(x_ref, w_ref, p_ref, gate_ref, out_ref):
    # Fallback path: output laid out as [E, B, D]; this block is [1, B, D].
    out_ref[0] = _expert_tile(x_ref, w_ref, p_ref, gate_ref, out_ref.dtype)


# ----------------------------------------------------------------------------- wrapper


@functools.partial(jax.jit, static_argnames=("matmul_dtype",))
def expert_head_forward(x_chunk, gate_head, w, b, gamma, beta, *, matmul_dtype=jnp.bfloat16):
    """x_chunk: [E, B, D]; gate_head: [B, 1, E]; w: [E, D, D] ([in, out]); b/gamma/beta: [E, D].

    Returns [B, E, D], matching torch.stack(expert_outputs, dim=1) * gate_head.squeeze(1).unsqueeze(2).
    matmul_dtype=jnp.bfloat16 (default) runs the MXU in bf16 with f32 accumulation; pass
    jnp.float32 (or None to keep the native dtype) for full-precision weights."""
    E, B, D = x_chunk.shape
    out_dtype = x_chunk.dtype

    if matmul_dtype is not None:
        x_chunk = x_chunk.astype(matmul_dtype)
        w = w.astype(matmul_dtype)

    # Glue (tiny): gate -> [E, B, 1] f32; bias/gamma/beta -> one [E, 3, D] f32 array.
    # TODO(synk): gate could move to SMEM scalar-prefetch to drop one per-step VMEM DMA.
    gate = jnp.transpose(gate_head[:, 0, :], (1, 0))[:, :, None].astype(jnp.float32)
    params = jnp.stack([b, gamma, beta], axis=1).astype(jnp.float32)             # [E, 3, D]

    capacity = _vmem_capacity_bytes()
    tn, weight_buffers = _pick_feature_tile(B, D, x_chunk.dtype, w.dtype, out_dtype, capacity)
    n_tiles = D // tn
    lane_dense = (D % 128 == 0)

    # Contiguous weight tiles: [E, n_tiles, D, tn]; free reshape when n_tiles == 1.
    # In production this re-layout should happen once at weight-load time (weights are static).
    w4 = jnp.transpose(w.reshape(E, D, n_tiles, tn), (0, 2, 1, 3))

    w_block = (1, 1, D, tn)
    w_index = lambda e, n: (e, n, 0, 0)
    if weight_buffers > 2:
        try:
            w_spec = pl.BlockSpec(w_block, w_index, pipeline_mode=pl.Buffered(weight_buffers))
        except TypeError:  # older jax without pipeline_mode support
            w_spec = pl.BlockSpec(w_block, w_index)
    else:
        w_spec = pl.BlockSpec(w_block, w_index)

    in_specs = [
        pl.BlockSpec((1, B, D), lambda e, n: (e, 0, 0)),     # x: resident across feature tiles
        w_spec,                                              # weights: contiguous (D, tn) tile
        pl.BlockSpec((1, 3, tn), lambda e, n: (e, 0, n)),    # bias / gamma / beta (small side DMA)
        pl.BlockSpec((1, B, 1), lambda e, n: (e, 0, 0)),     # gate
    ]

    if lane_dense:
        kernel = expert_head_kernel_bed
        out_shape = jax.ShapeDtypeStruct((B, E * D), out_dtype)
        out_spec = pl.BlockSpec((B, tn), lambda e, n: (0, e * n_tiles + n))
    else:
        kernel = expert_head_kernel_ebd
        out_shape = jax.ShapeDtypeStruct((E, B, D), out_dtype)
        out_spec = pl.BlockSpec((1, B, D), lambda e, n: (e, 0, 0))

    total_bytes = _block_bytes(B, D, tn, x_chunk.dtype, w.dtype, out_dtype, weight_buffers)
    vmem_limit = int(min(capacity, max(total_bytes + (4 << 20), 32 << 20)))

    out = pl.pallas_call(
        kernel,
        out_shape=out_shape,
        grid_spec=pltpu.PrefetchScalarGridSpec(
            num_scalar_prefetch=0,
            grid=(E, n_tiles),
            in_specs=in_specs,
            out_specs=out_spec,
        ),
        compiler_params=pltpu.CompilerParams(
            # Both axes independent -> shardable across v7x's two TensorCores.
            dimension_semantics=("parallel", "parallel"),
            vmem_limit_bytes=vmem_limit,
        ),
    )(x_chunk, w4, params, gate)

    if lane_dense:
        # [B, E*D] -> [B, E, D]: contiguous reshape, no data movement.
        return out.reshape(B, E, D)
    # TODO(synk): non-lane-dense D falls back to an XLA transpose (extra HBM pass).
    return jnp.transpose(out, (1, 0, 2))


# ----------------------------------------------------------------------------- reference


def expert_head_reference(x_chunk, gate_head, w, b, gamma, beta, matmul_dtype=None,
                          precision=None):
    """Pure-JAX reference mirroring the PyTorch forward (training-mode BatchNorm)."""
    E, B, D = x_chunk.shape
    xm, wm = x_chunk, w
    if matmul_dtype is not None:
        xm = xm.astype(matmul_dtype).astype(jnp.float32)
        wm = wm.astype(matmul_dtype).astype(jnp.float32)
    outs = []
    for e in range(E):
        h = jnp.dot(xm[e].astype(jnp.float32), wm[e].astype(jnp.float32),
                    preferred_element_type=jnp.float32, precision=precision) + b[e]
        g = h * jax.nn.sigmoid(1.702 * h)
        mean = jnp.mean(g, axis=0, keepdims=True)
        var = jnp.mean(jnp.square(g - mean), axis=0, keepdims=True)
        y = (g - mean) / jnp.sqrt(var + BN_EPS) * gamma[e] + beta[e]
        outs.append(y)
    stacked = jnp.stack(outs, axis=1)                               # [B, E, D]
    gate = gate_head[:, 0, :][:, :, None]                           # [B, E, 1]
    return (stacked * gate).astype(x_chunk.dtype)


if __name__ == "__main__":
    E, B, D = 4, 16, 128   # num_experts, batch, input_dim (lane-dense, B multiple of 16)

    key = jax.random.PRNGKey(0)
    kx, kg, kw, kb, kgm, kbt = jax.random.split(key, 6)

    x_chunk = jax.random.normal(kx, (E, B, D), dtype=jnp.float32)
    gate_head = jax.nn.softmax(jax.random.normal(kg, (B, 1, E), dtype=jnp.float32), axis=-1)

    w = jax.random.normal(kw, (E, D, D), dtype=jnp.float32) * (1.0 / jnp.sqrt(D))  # [E, in, out]
    b = jax.random.normal(kb, (E, D), dtype=jnp.float32) * 0.1
    gamma = 1.0 + 0.1 * jax.random.normal(kgm, (E, D), dtype=jnp.float32)
    beta = 0.05 * jax.random.normal(kbt, (E, D), dtype=jnp.float32)

    # 1) Default production path: bf16 MXU matmul, f32 epilogue, vs. bf16-rounded reference.
    out_bf16 = jax.block_until_ready(expert_head_forward(x_chunk, gate_head, w, b, gamma, beta))
    ref_bf16 = expert_head_reference(x_chunk, gate_head, w, b, gamma, beta,
                                     matmul_dtype=jnp.bfloat16)
    assert out_bf16.shape == (B, E, D), out_bf16.shape
    assert jnp.allclose(out_bf16, ref_bf16, atol=5e-3, rtol=5e-3), \
        float(jnp.max(jnp.abs(out_bf16 - ref_bf16)))

    # 2) f32 weight path (explicit opt-out).  Tolerance is loose because Mosaic's and XLA's
    #    default f32-matmul precisions on TPU can use different numbers of bf16 passes.
    out_f32 = jax.block_until_ready(
        expert_head_forward(x_chunk, gate_head, w, b, gamma, beta, matmul_dtype=jnp.float32))
    ref_f32 = expert_head_reference(x_chunk, gate_head, w, b, gamma, beta,
                                    precision=jax.lax.Precision.HIGHEST)
    assert jnp.allclose(out_f32, ref_f32, atol=2.5e-2, rtol=2.5e-2), \
        float(jnp.max(jnp.abs(out_f32 - ref_f32)))

    print("KERNEL_OK")
</pallas_src>

<mosaic_0001>
module attributes {stable_mosaic.version = 11 : i64} {
  func.func @expert_head_kernel_bed(%arg0: i32, %arg1: i32, %arg2: memref<1x16x128xbf16, #tpu.memory_space<vmem>>, %arg3: memref<1x1x128x128xbf16, #tpu.memory_space<vmem>>, %arg4: memref<1x3x128xf32, #tpu.memory_space<vmem>>, %arg5: memref<1x16x1xf32, #tpu.memory_space<vmem>>, %arg6: memref<16x128xf32, #tpu.memory_space<vmem>>) attributes {dimension_semantics = [#tpu.dimension_semantics<parallel>, #tpu.dimension_semantics<parallel>], iteration_bounds = array<i64: 4, 1>, scalar_prefetch = 0 : i64, scratch_operands = 0 : i64, tpu.core_type = #tpu.core_type<tc>, window_params = [{transform_indices = @transform_0, window_bounds = array<i64: 1, 16, 128>}, {transform_indices = @transform_1, window_bounds = array<i64: 1, 1, 128, 128>}, {transform_indices = @transform_2, window_bounds = array<i64: 1, 3, 128>}, {transform_indices = @transform_3, window_bounds = array<i64: 1, 16, 1>}, {transform_indices = @transform_4, window_bounds = array<i64: 16, 128>}]} {
    %c0 = arith.constant 0 : index
    %c0_0 = arith.constant 0 : index
    %c0_1 = arith.constant 0 : index
    %0 = vector.load %arg2[%c0, %c0_0, %c0_1] : memref<1x16x128xbf16, #tpu.memory_space<vmem>>, vector<1x16x128xbf16>
    %1 = vector.shape_cast %0 : vector<1x16x128xbf16> to vector<16x128xbf16>
    %c0_2 = arith.constant 0 : index
    %c0_3 = arith.constant 0 : index
    %c0_4 = arith.constant 0 : index
    %c0_5 = arith.constant 0 : index
    %2 = vector.load %arg3[%c0_2, %c0_3, %c0_4, %c0_5] : memref<1x1x128x128xbf16, #tpu.memory_space<vmem>>, vector<1x1x128x128xbf16>
    %3 = vector.shape_cast %2 : vector<1x1x128x128xbf16> to vector<128x128xbf16>
    %cst = arith.constant dense<0.000000e+00> : vector<16x128xf32>
    %4 = tpu.matmul %1, %3, %cst {dimension_numbers = #tpu.dot_dimension_numbers<[1], [0], [0], [1], [0, 0, 1, 1], [], []>} : vector<16x128xbf16>, vector<128x128xbf16>, vector<16x128xf32> -> vector<16x128xf32>
    %c0_6 = arith.constant 0 : index
    %c0_7 = arith.constant 0 : index
    %c0_8 = arith.constant 0 : index
    %5 = vector.load %arg4[%c0_6, %c0_7, %c0_8] : memref<1x3x128xf32, #tpu.memory_space<vmem>>, vector<1x3x128xf32>
    %6 = vector.shape_cast %5 : vector<1x3x128xf32> to vector<3x128xf32>
    %7 = vector.extract_strided_slice %6 {offsets = [0, 0], sizes = [1, 128], strides = [1, 1]} : vector<3x128xf32> to vector<1x128xf32>
    %8 = vector.broadcast %7 : vector<1x128xf32> to vector<16x128xf32>
    %9 = arith.addf %4, %8 : vector<16x128xf32>
    %cst_9 = arith.constant 1.702000e+00 : f32
    %10 = vector.broadcast %cst_9 : f32 to vector<16x128xf32>
    %11 = arith.mulf %10, %9 : vector<16x128xf32>
    %12 = arith.negf %11 : vector<16x128xf32>
    %13 = math.exp %12 : vector<16x128xf32>
    %cst_10 = arith.constant 1.000000e+00 : f32
    %14 = vector.broadcast %cst_10 : f32 to vector<16x128xf32>
    %15 = arith.addf %14, %13 : vector<16x128xf32>
    %16 = arith.divf %14, %15 : vector<16x128xf32>
    %17 = arith.mulf %9, %16 : vector<16x128xf32>
    %cst_11 = arith.constant dense<0.000000e+00> : vector<128xf32>
    %18 = vector.multi_reduction <add>, %17, %cst_11 [0] : vector<16x128xf32> to vector<128xf32>
    %19 = vector.shape_cast %18 : vector<128xf32> to vector<1x128xf32>
    %cst_12 = arith.constant 1.600000e+01 : f32
    %20 = vector.broadcast %cst_12 : f32 to vector<1x128xf32>
    %21 = arith.divf %19, %20 : vector<1x128xf32>
    %22 = vector.broadcast %21 : vector<1x128xf32> to vector<16x128xf32>
    %23 = arith.subf %17, %22 : vector<16x128xf32>
    %24 = arith.mulf %23, %23 : vector<16x128xf32>
    %cst_13 = arith.constant dense<0.000000e+00> : vector<128xf32>
    %25 = vector.multi_reduction <add>, %24, %cst_13 [0] : vector<16x128xf32> to vector<128xf32>
    %26 = vector.shape_cast %25 : vector<128xf32> to vector<1x128xf32>
    %cst_14 = arith.constant 1.600000e+01 : f32
    %27 = vector.broadcast %cst_14 : f32 to vector<1x128xf32>
    %28 = arith.divf %26, %27 : vector<1x128xf32>
    %29 = vector.extract_strided_slice %6 {offsets = [1, 0], sizes = [1, 128], strides = [1, 1]} : vector<3x128xf32> to vector<1x128xf32>
    %cst_15 = arith.constant 9.99999974E-6 : f32
    %30 = vector.broadcast %cst_15 : f32 to vector<1x128xf32>
    %31 = arith.addf %28, %30 : vector<1x128xf32>
    %32 = math.rsqrt %31 : vector<1x128xf32>
    %33 = arith.mulf %29, %32 : vector<1x128xf32>
    %c0_16 = arith.constant 0 : index
    %c0_17 = arith.constant 0 : index
    %c0_18 = arith.constant 0 : index
    %34 = vector.load %arg5[%c0_16, %c0_17, %c0_18] : memref<1x16x1xf32, #tpu.memory_space<vmem>>, vector<1x16x1xf32>
    %35 = vector.shape_cast %34 : vector<1x16x1xf32> to vector<16x1xf32>
    %36 = vector.broadcast %33 : vector<1x128xf32> to vector<16x128xf32>
    %37 = arith.mulf %23, %36 : vector<16x128xf32>
    %38 = vector.extract_strided_slice %6 {offsets = [2, 0], sizes = [1, 128], strides = [1, 1]} : vector<3x128xf32> to vector<1x128xf32>
    %39 = vector.broadcast %38 : vector<1x128xf32> to vector<16x128xf32>
    %40 = arith.addf %37, %39 : vector<16x128xf32>
    %41 = vector.broadcast %35 : vector<16x1xf32> to vector<16x128xf32>
    %42 = arith.mulf %40, %41 : vector<16x128xf32>
    %c0_19 = arith.constant 0 : index
    %c0_20 = arith.constant 0 : index
    %43 = vector.load %arg6[%c0_19, %c0_20] : memref<16x128xf32, #tpu.memory_space<vmem>>, vector<16x128xf32>
    tpu.vector_store %arg6[%c0_19, %c0_20], %42 {strides = array<i32>} : memref<16x128xf32, #tpu.memory_space<vmem>>, vector<16x128xf32>,
    return
  }
  func.func @transform_0(%arg0: i32, %arg1: i32) -> (i32, i32, i32) {
    %c0_i32 = arith.constant 0 : i32
    %c0_i32_0 = arith.constant 0 : i32
    %c0_i32_1 = arith.constant 0 : i32
    return %arg0, %c0_i32, %c0_i32_0 : i32, i32, i32
  }
  func.func @transform_1(%arg0: i32, %arg1: i32) -> (i32, i32, i32, i32) {
    %c0_i32 = arith.constant 0 : i32
    %c0_i32_0 = arith.constant 0 : i32
    %c0_i32_1 = arith.constant 0 : i32
    return %arg0, %arg1, %c0_i32, %c0_i32_0 : i32, i32, i32, i32
  }
  func.func @transform_2(%arg0: i32, %arg1: i32) -> (i32, i32, i32) {
    %c0_i32 = arith.constant 0 : i32
    %c0_i32_0 = arith.constant 0 : i32
    return %arg0, %c0_i32, %arg1 : i32, i32, i32
  }
  func.func @transform_3(%arg0: i32, %arg1: i32) -> (i32, i32, i32) {
    %c0_i32 = arith.constant 0 : i32
    %c0_i32_0 = arith.constant 0 : i32
    %c0_i32_1 = arith.constant 0 : i32
    return %arg0, %c0_i32, %c0_i32_0 : i32, i32, i32
  }
  func.func @transform_4(%arg0: i32, %arg1: i32) -> (i32, i32) {
    %c1_i32 = arith.constant 1 : i32
    %0 = arith.muli %arg0, %c1_i32 : i32
    %1 = arith.addi %0, %arg1 : i32
    %c0_i32 = arith.constant 0 : i32
    %c0_i32_0 = arith.constant 0 : i32
    return %c0_i32, %1 : i32, i32
  }
}

</mosaic_0001>

<llo_original>
// kernel: expert_head_forward.1
$region0: #{expert_head_forward.1}
  #allocation0 [shape = 'u32[]', space=smem, size = 0x4, offset = 0x4, fixed_abs, tag = 'smem constant byte address 0x4 - core index']
  #allocation1 [shape = 'u32[72,128]{1,0:T(1,128)}', space=vmem, size = 0x9000, scoped, tag = 'internal scratch']
  %s0 = inlined_call_operand.vmem [shape: bf16[4,16,128], index: 0, kind: input, shape index: {}]
  %s1 = inlined_call_operand.vmem [shape: bf16[4,1,128,128], index: 1, kind: input, shape index: {}]
  %s2 = inlined_call_operand.vmem [shape: f32[4,3,128], index: 2, kind: input, shape index: {}]
  %s3 = inlined_call_operand.vmem [shape: f32[4,16,1], index: 3, kind: input, shape index: {}]
  %s4 = inlined_call_operand.vmem [shape: f32[16,512], index: 4, kind: output, shape index: {}]
  %s5 = sld [smem:[#allocation0]]
  $region83: #{expert_head_forward.1} parent=0
    _
  %s7 = ssub.s32 1, %s5
  %s8 = scalar_select 0, %s7, %s5
  $region1: #{expert_head_forward.1} parent=0
    #allocation2 [shape = 'u8[16384]{0}', space=vmem, size = 0x4000, scoped, tag = 'output window, operand 0']
    loop: start=0, step=1, limit=6
    $region2: #{expert_head_forward.1} parent=1 // loop_pre_header
      _
    $region3: #{expert_head_forward.1} parent=1 // loop_header
      %s10 = sphi 0, %s14
      %p11 = scmp.ge.s32.totalorder %s10, 6
      %s17 = sphi 0, %s29
      %s18 = sphi 0, %s25
      %s19 = sphi 0, %s17
      %s20 = sphi 0, %s18
      %s21 = sphi 0, %s19
      %s22 = sphi 0, %s20
      %s32 = sphi 0, %s34
      %s35 = sphi 0, %s32
      %s36 = sphi 0, %s35
      %s52 = sphi 0, %s36
      %s60 = sphi 0, %s62
      %s63 = sphi 0, %s60
      %s64 = sphi 0, %s63
      %s80 = sphi 0, %s64
      %s88 = sphi 0, %s90
      %s91 = sphi 0, %s88
      %s92 = sphi 0, %s91
      %s108 = sphi 0, %s92
      %s114 = sphi 0, %s116
      %s117 = sphi 0, %s114
      %s118 = sphi 0, %s117
      %s134 = sphi 0, %s118
      %s142 = sphi 0, %s144
      %s145 = sphi 0, %s142
      %s146 = sphi 0, %s145
      %s162 = sphi 0, %s146
    $region4: #{expert_head_forward.1} parent=1 // loop_header_branch
      %13 = sbr.rel (%p11) target = $region8
    $region5: #{expert_head_forward.1} parent=1 // loop_body
      %s15 = ssub.s32 %s10, 1
      %s16 = ssub.s32 %s10, 2
      %s23 = sadd.s32 1, %s18
      %p24 = scmp.ge.s32.totalorder %s23, 1
      %s25 = scalar_select %p24, 0, %s23
      %s26 = sadd.s32 1, %s17
      %s27 = scalar_select %p24, %s26, %s17
      %p28 = scmp.ge.s32.totalorder %s27, 4
      %s29 = scalar_select %p28, 0, %s27
      %s30 = ssub.s32 %s17, %s29
      %p31 = scmp.eq.s32.totalorder %s30, 0
      %s33 = sadd.s32 %s32, 1
      %s34 = scalar_select %p31, %s32, %s33
      %p37 = pneg %p31
      %p38 = scmp.eq.s32.totalorder %s10, 3
      %p39 = por %p37, %p38
      %p40 = scmp.ne.s32.totalorder %s32, %s35
      %p41 = scmp.eq.s32.totalorder %s10, 0
      %p42 = por %p40, %p41
      %p43 = scmp.ne.s32.totalorder %s32, %s35
      %p44 = scmp.eq.s32.totalorder %s15, 3
      %p45 = por %p43, %p44
      %p46 = scmp.ne.s32.totalorder %s35, %s36
      %p47 = scmp.eq.s32.totalorder %s15, 0
      %p48 = por %p46, %p47
      %p49 = scmp.ne.s32.totalorder %s35, %s36
      %p50 = scmp.eq.s32.totalorder %s16, 3
      %p51 = por %p49, %p50
      %p53 = scmp.ne.s32.totalorder %s36, %s52
      %p54 = scmp.eq.s32.totalorder %s16, 0
      %p55 = por %p53, %p54
      %s56 = ssub.s32 %s17, %s29
      %s57 = ssub.s32 %s18, %s25
      %s58 = sor.u32 %s56, %s57
      %p59 = scmp.eq.s32.totalorder %s58, 0
      %s61 = sadd.s32 %s60, 1
      %s62 = scalar_select %p59, %s60, %s61
      %p65 = pneg %p59
      %p66 = scmp.eq.s32.totalorder %s10, 3
      %p67 = por %p65, %p66
      %p68 = scmp.ne.s32.totalorder %s60, %s63
      %p69 = scmp.eq.s32.totalorder %s10, 0
      %p70 = por %p68, %p69
      %p71 = scmp.ne.s32.totalorder %s60, %s63
      %p72 = scmp.eq.s32.totalorder %s15, 3
      %p73 = por %p71, %p72
      %p74 = scmp.ne.s32.totalorder %s63, %s64
      %p75 = scmp.eq.s32.totalorder %s15, 0
      %p76 = por %p74, %p75
      %p77 = scmp.ne.s32.totalorder %s63, %s64
      %p78 = scmp.eq.s32.totalorder %s16, 3
      %p79 = por %p77, %p78
      %p81 = scmp.ne.s32.totalorder %s64, %s80
      %p82 = scmp.eq.s32.totalorder %s16, 0
      %p83 = por %p81, %p82
      %s84 = ssub.s32 %s17, %s29
      %s85 = ssub.s32 %s18, %s25
      %s86 = sor.u32 %s84, %s85
      %p87 = scmp.eq.s32.totalorder %s86, 0
      %s89 = sadd.s32 %s88, 1
      %s90 = scalar_select %p87, %s88, %s89
      %p93 = pneg %p87
      %p94 = scmp.eq.s32.totalorder %s10, 3
      %p95 = por %p93, %p94
      %p96 = scmp.ne.s32.totalorder %s88, %s91
      %p97 = scmp.eq.s32.totalorder %s10, 0
      %p98 = por %p96, %p97
      %p99 = scmp.ne.s32.totalorder %s88, %s91
      %p100 = scmp.eq.s32.totalorder %s15, 3
      %p101 = por %p99, %p100
      %p102 = scmp.ne.s32.totalorder %s91, %s92
      %p103 = scmp.eq.s32.totalorder %s15, 0
      %p104 = por %p102, %p103
      %p105 = scmp.ne.s32.totalorder %s91, %s92
      %p106 = scmp.eq.s32.totalorder %s16, 3
      %p107 = por %p105, %p106
      %p109 = scmp.ne.s32.totalorder %s92, %s108
      %p110 = scmp.eq.s32.totalorder %s16, 0
      %p111 = por %p109, %p110
      %s112 = ssub.s32 %s17, %s29
      %p113 = scmp.eq.s32.totalorder %s112, 0
      %s115 = sadd.s32 %s114, 1
      %s116 = scalar_select %p113, %s114, %s115
      %p119 = pneg %p113
      %p120 = scmp.eq.s32.totalorder %s10, 3
      %p121 = por %p119, %p120
      %p122 = scmp.ne.s32.totalorder %s114, %s117
      %p123 = scmp.eq.s32.totalorder %s10, 0
      %p124 = por %p122, %p123
      %p125 = scmp.ne.s32.totalorder %s114, %s117
      %p126 = scmp.eq.s32.totalorder %s15, 3
      %p127 = por %p125, %p126
      %p128 = scmp.ne.s32.totalorder %s117, %s118
      %p129 = scmp.eq.s32.totalorder %s15, 0
      %p130 = por %p128, %p129
      %p131 = scmp.ne.s32.totalorder %s117, %s118
      %p132 = scmp.eq.s32.totalorder %s16, 3
      %p133 = por %p131, %p132
      %p135 = scmp.ne.s32.totalorder %s118, %s134
      %p136 = scmp.eq.s32.totalorder %s16, 0
      %p137 = por %p135, %p136
      %s138 = sadd.s32 %s17, %s18
      %s139 = sadd.s32 %s29, %s25
      %s140 = ssub.s32 %s138, %s139
      %p141 = scmp.eq.s32.totalorder %s140, 0
      %s143 = sadd.s32 %s142, 1
      %s144 = scalar_select %p141, %s142, %s143
      %p147 = pneg %p141
      %p148 = scmp.eq.s32.totalorder %s10, 3
      %p149 = por %p147, %p148
      %p150 = scmp.ne.s32.totalorder %s142, %s145
      %p151 = scmp.eq.s32.totalorder %s10, 0
      %p152 = por %p150, %p151
      %p153 = scmp.ne.s32.totalorder %s142, %s145
      %p154 = scmp.eq.s32.totalorder %s15, 3
      %p155 = por %p153, %p154
      %p156 = scmp.ne.s32.totalorder %s145, %s146
      %p157 = scmp.eq.s32.totalorder %s15, 0
      %p158 = por %p156, %p157
      %p159 = scmp.ne.s32.totalorder %s145, %s146
      %p160 = scmp.eq.s32.totalorder %s16, 3
      %p161 = por %p159, %p160
      %p163 = scmp.ne.s32.totalorder %s146, %s162
      %p164 = scmp.eq.s32.totalorder %s16, 0
      %p165 = por %p163, %p164
      %p166 = scmp.le.s32.totalorder 1, %s10
      %p167 = scmp.lt.s32.totalorder %s10, 5
      %p168 = pnand %p166, %p167
      %p169 = pneg %p168
      // Predicated region
      $region9: #{expert_head_forward.1} parent=5 // pred_check
        _
      $region10: #{expert_head_forward.1} parent=5 // pred_check_branch
        %171 = sbr.rel (%p168) target = $region12
      $region11: #{expert_head_forward.1} parent=5 // pred_region
        %s172 = ssub.s32 %s10, 1
      $region12: #{expert_head_forward.1} parent=5 // pred_fallthru
        _
      %p173 = scmp.lt.s32.totalorder %s10, 4
      // Predicated region
      $region13: #{expert_head_forward.1} parent=5 // pred_check
        %p174 = pneg %p173
      $region14: #{expert_head_forward.1} parent=5 // pred_check_branch
        %176 = sbr.rel (%p174) target = $region16
      $region15: #{expert_head_forward.1} parent=5 // pred_region
        // Predicated region
        $region17: #{expert_head_forward.1} parent=15 // pred_check
          %p177 = pneg %p42
        $region18: #{expert_head_forward.1} parent=15 // pred_check_branch
          %179 = sbr.rel (%p177) target = $region20
        $region19: #{expert_head_forward.1} parent=15 // pred_region
          %p180 = scmp.lt.s32.totalorder %s17, 3
          %s181 = scalar_select %p180, %s17, 3
          %s182 = smul.addr %s181, 2
          %s183 = smul.addr %s182, 4
          %s184 = scalar_lea.vmem %s0, %s183
        $region20: #{expert_head_forward.1} parent=15 // pred_fallthru
          _
        // Predicated region
        $region21: #{expert_head_forward.1} parent=15 // pred_check
          %p185 = pneg %p70
        $region22: #{expert_head_forward.1} parent=15 // pred_check_branch
          %187 = sbr.rel (%p185) target = $region24
        $region23: #{expert_head_forward.1} parent=15 // pred_region
          %p188 = scmp.lt.s32.totalorder %s17, 3
          %s189 = scalar_select %p188, %s17, 3
          %p190 = scmp.lt.s32.totalorder %s18, 0
          %s191 = scalar_select %p190, %s18, 0
          %s192 = smul.addr %s191, 16
          %s193 = smul.addr %s189, 16
          %s194 = sadd.s32 %s192, %s193
          %s195 = smul.addr %s194, 4
          %s196 = scalar_lea.vmem %s1, %s195
        $region24: #{expert_head_forward.1} parent=15 // pred_fallthru
          _
        // Predicated region
        $region25: #{expert_head_forward.1} parent=15 // pred_check
          %p197 = pneg %p98
        $region26: #{expert_head_forward.1} parent=15 // pred_check_branch
          %199 = sbr.rel (%p197) target = $region28
        $region27: #{expert_head_forward.1} parent=15 // pred_region
          %p200 = scmp.lt.s32.totalorder %s17, 3
          %s201 = scalar_select %p200, %s17, 3
          %p202 = scmp.lt.s32.totalorder %s18, 0
          %s203 = scalar_select %p202, %s18, 0
          %s204 = sadd.s32 %s203, %s201
          %s205 = smul.addr %s204, 4
          %s206 = scalar_lea.vmem %s2, %s205
        $region28: #{expert_head_forward.1} parent=15 // pred_fallthru
          _
        // Predicated region
        $region29: #{expert_head_forward.1} parent=15 // pred_check
          %p207 = pneg %p124
        $region30: #{expert_head_forward.1} parent=15 // pred_check_branch
          %209 = sbr.rel (%p207) target = $region32
        $region31: #{expert_head_forward.1} parent=15 // pred_region
          %p210 = scmp.lt.s32.totalorder %s17, 3
          %s211 = scalar_select %p210, %s17, 3
          %s212 = smul.addr %s211, 2
          %s213 = smul.addr %s212, 8
          %s214 = scalar_lea.vmem %s3, %s213
        $region32: #{expert_head_forward.1} parent=15 // pred_fallthru
          _
      $region16: #{expert_head_forward.1} parent=5 // pred_fallthru
        _
      %p215 = scmp.le.s32.totalorder 1, %s10
      %p216 = scmp.lt.s32.totalorder %s10, 5
      %p217 = pnand %p215, %p216
      %p218 = pneg %p217
      // Predicated region
      $region33: #{expert_head_forward.1} parent=5 // pred_check
        _
      $region34: #{expert_head_forward.1} parent=5 // pred_check_branch
        %220 = sbr.rel (%p217) target = $region36
      $region35: #{expert_head_forward.1} parent=5 // pred_region
        %s221 = ssub.s32 %s10, 1
        %p222 = scmp.lt.s32.totalorder %s19, 3
        %s223 = scalar_select %p222, %s19, 3
        %s224 = smul.addr %s223, 2
        %s225 = smul.addr %s224, 4
        %s226 = scalar_lea.vmem %s0, %s225
        %p227 = pneg %p48
        %p228 = pneg %p45
        %p229 = scmp.lt.s32.totalorder %s19, 3
        %s230 = scalar_select %p229, %s19, 3
        %p231 = scmp.lt.s32.totalorder %s20, 0
        %s232 = scalar_select %p231, %s20, 0
        %s233 = smul.addr %s232, 16
        %s234 = smul.addr %s230, 16
        %s235 = sadd.s32 %s233, %s234
        %s236 = smul.addr %s235, 4
        %s237 = scalar_lea.vmem %s1, %s236
        %p238 = pneg %p76
        %p239 = pneg %p73
        %p240 = scmp.lt.s32.totalorder %s19, 3
        %s241 = scalar_select %p240, %s19, 3
        %p242 = scmp.lt.s32.totalorder %s20, 0
        %s243 = scalar_select %p242, %s20, 0
        %s244 = sadd.s32 %s243, %s241
        %s245 = smul.addr %s244, 4
        %s246 = scalar_lea.vmem %s2, %s245
        %p247 = pneg %p104
        %p248 = pneg %p101
        %p249 = scmp.lt.s32.totalorder %s19, 3
        %s250 = scalar_select %p249, %s19, 3
        %s251 = smul.addr %s250, 2
        %s252 = smul.addr %s251, 8
        %s253 = scalar_lea.vmem %s3, %s252
        %p254 = pneg %p130
        %p255 = pneg %p127
        %p256 = pneg %p158
        %p257 = pneg %p155
        %s258 = sand.u32 %s145, 1
        %s259 = sand.u32 %s145, 1
        %s260 = smul.addr %s259, 16
        %s261 = scalar_lea.vmem [#allocation2], %s260
        %p262 = scmp.lt.s32.totalorder %s19, 3
        %s263 = scalar_select %p262, %s19, 3
        %s264 = smul.addr %s263, 2
        %s265 = smul.addr %s264, 4
        %s266 = scalar_lea.vmem %s0, %s265
        %p267 = scmp.lt.s32.totalorder %s19, 3
        %s268 = scalar_select %p267, %s19, 3
        %p269 = scmp.lt.s32.totalorder %s20, 0
        %s270 = scalar_select %p269, %s20, 0
        %s271 = smul.addr %s270, 16
        %s272 = smul.addr %s268, 16
        %s273 = sadd.s32 %s271, %s272
        %s274 = smul.addr %s273, 4
        %s275 = scalar_lea.vmem %s1, %s274
        %p276 = scmp.lt.s32.totalorder %s19, 3
        %s277 = scalar_select %p276, %s19, 3
        %p278 = scmp.lt.s32.totalorder %s20, 0
        %s279 = scalar_select %p278, %s20, 0
        %s280 = sadd.s32 %s279, %s277
        %s281 = smul.addr %s280, 4
        %s282 = scalar_lea.vmem %s2, %s281
        %p283 = scmp.lt.s32.totalorder %s19, 3
        %s284 = scalar_select %p283, %s19, 3
        %s285 = smul.addr %s284, 2
        %s286 = smul.addr %s285, 8
        %s287 = scalar_lea.vmem %s3, %s286
        %s288 = sadd.s32 %s19, %s20
        %v289 = vld [vmem:[%s266] sm:$0xf]
        %v290 = vld [vmem:[%s266 + $0x4] sm:$0xf]
        %v291 = vld [vmem:[%s275] sm:$0xf]
        %v292 = vld [vmem:[%s275 + $0x4] sm:$0xf]
        %v293 = vld [vmem:[%s275 + $0x8] sm:$0xf]
        %v294 = vld [vmem:[%s275 + $0xc] sm:$0xf]
        %v295 = vld [vmem:[%s275 + $0x10] sm:$0xf]
        %v296 = vld [vmem:[%s275 + $0x14] sm:$0xf]
        %v297 = vld [vmem:[%s275 + $0x18] sm:$0xf]
        %v298 = vld [vmem:[%s275 + $0x1c] sm:$0xf]
        %v299 = vld [vmem:[%s275 + $0x20] sm:$0xf]
        %v300 = vld [vmem:[%s275 + $0x24] sm:$0xf]
        %v301 = vld [vmem:[%s275 + $0x28] sm:$0xf]
        %v302 = vld [vmem:[%s275 + $0x2c] sm:$0xf]
        %v303 = vld [vmem:[%s275 + $0x30] sm:$0xf]
        %v304 = vld [vmem:[%s275 + $0x34] sm:$0xf]
        %v305 = vld [vmem:[%s275 + $0x38] sm:$0xf]
        %v306 = vld [vmem:[%s275 + $0x3c] sm:$0xf]
        %v307 = vld [vmem:[%s282] sm:$0x7]
        %v308 = vperm.slane %v307, 0
        %v311 = vunpack.c.l.b16 %v289
        %v312 = vunpack.c.l.b16 %v290
        %v313 = vpack.c.b16 %v312, %v311
        %v331 = vunpack.c.l.b16 %v291
        %v332 = vunpack.c.l.b16 %v292
        %v333 = vunpack.c.l.b16 %v293
        %v334 = vunpack.c.l.b16 %v294
        %v335 = vunpack.c.l.b16 %v295
        %v336 = vunpack.c.l.b16 %v296
        %v337 = vunpack.c.l.b16 %v297
        %v338 = vunpack.c.l.b16 %v298
        %v339 = vunpack.c.l.b16 %v299
        %v340 = vunpack.c.l.b16 %v300
        %v341 = vunpack.c.l.b16 %v301
        %v342 = vunpack.c.l.b16 %v302
        %v343 = vunpack.c.l.b16 %v303
        %v344 = vunpack.c.l.b16 %v304
        %v345 = vunpack.c.l.b16 %v305
        %v346 = vunpack.c.l.b16 %v306
        %v347 = vpack.c.b16 %v332, %v331
        %v348 = vpack.c.b16 %v334, %v333
        %v349 = vpack.c.b16 %v336, %v335
        %v350 = vpack.c.b16 %v338, %v337
        %v351 = vpack.c.b16 %v340, %v339
        %v352 = vpack.c.b16 %v342, %v341
        %v353 = vpack.c.b16 %v344, %v343
        %v354 = vpack.c.b16 %v346, %v345
        %363 = vmatpush.bf16.msra.mxu0 %v354
        %364 = vmatpush.bf16.msra.mxu0 %v353
        %365 = vmatpush.bf16.msra.mxu0 %v352
        %366 = vmatpush.bf16.msra.mxu0 %v351
        %367 = vmatpush.bf16.msra.mxu0 %v350
        %368 = vmatpush.bf16.msra.mxu0 %v349
        %369 = vmatpush.bf16.msra.mxu0 %v348
        %370 = vmatpush.bf16.msra.mxu0 %v347
        %371 = vmatmul.bf16.gmra.mxu0 %v313
        %v372 = vpop.f32.mrf.mxu0
        %v373 = vadd.f32 %v308, %v372
        %v374 = vpop.f32.mrf.mxu0
        %v375 = vadd.f32 %v308, %v374
        %376 = vdwg.mxu0
        %v377 = vmul.f32 %v373, 1.702
        %v378 = vmul.f32 %v375, 1.702
        %v379 = vxor.u32 %v377, 2147483648
        %v380 = vxor.u32 %v378, 2147483648
        %v381 = vmul.f32 %v379, 1.442695
        %v382 = vpow.pop %v381
        %v383 = vmul.f32 %v380, 1.442695
        %v384 = vpow.pop %v383
        %v385 = vadd.f32 %v382, 1.0
        %v386 = vadd.f32 %v384, 1.0
        %v387 = vrcp.pop %v385
        %v388 = vmul.f32 %v385, %v387
        %v389 = vsub.f32 1.0, %v388
        %v390 = vmul.f32 %v387, %v389
        %v391 = vadd.f32 %v387, %v390
        %vm392 = vweird.f32 %v385
        %vm393 = vweird.f32 %v387
        %vm394 = vmor %vm392, %vm393
        %v395 = vsel %vm394, %v387, %v391
        %v396 = vand.u32 2147483647, %v385
        %vm397 = vcmp.eq.f32.partialorder %v396, 8.507059e+37
        %v398 = vand.u32 %v385, 2147483648
        %v399 = vor.u32 1.1754944e-38, %v398
        %v400 = vsel %vm397, %v399, %v395
        %v401 = vmul.f32 1.0, %v400
        %v402 = vrcp.pop %v386
        %v403 = vmul.f32 %v386, %v402
        %v404 = vsub.f32 1.0, %v403
        %v405 = vmul.f32 %v402, %v404
        %v406 = vadd.f32 %v402, %v405
        %vm407 = vweird.f32 %v386
        %vm408 = vweird.f32 %v402
        %vm409 = vmor %vm407, %vm408
        %v410 = vsel %vm409, %v402, %v406
        %v411 = vand.u32 2147483647, %v386
        %vm412 = vcmp.eq.f32.partialorder %v411, 8.507059e+37
        %v413 = vand.u32 %v386, 2147483648
        %v414 = vor.u32 1.1754944e-38, %v413
        %v415 = vsel %vm412, %v414, %v410
        %v416 = vmul.f32 1.0, %v415
        %v417 = vmul.f32 %v373, %v401
        %v418 = vmul.f32 %v375, %v416
        %v419 = vadd.f32 %v417, %v418
        %v420 = vrot.slane %v419, 4
        %v421 = vadd.f32 %v419, %v420
        %v422 = vrot.slane %v421, 2
        %v423 = vadd.f32 %v421, %v422
        %v424 = vrot.slane %v423, 1
        %v425 = vadd.f32 %v423, %v424
        %v426 = vrcp.pop 16.0
        %v427 = vmul.f32 16.0, %v426
        %v428 = vsub.f32 1.0, %v427
        %v429 = vmul.f32 %v426, %v428
        %v430 = vadd.f32 %v426, %v429
        %vm431 = vweird.f32 %v426
        %v432 = vsel %vm431, %v426, %v430
        %v433 = vmul.f32 %v425, %v432
        %v434 = vsub.f32 %v417, %v433
        %v435 = vsub.f32 %v418, %v433
        %v436 = vmul.f32 %v434, %v434
        %v437 = vmul.f32 %v435, %v435
        %v438 = vadd.f32 %v436, %v437
        %v439 = vrot.slane %v438, 4
        %v440 = vadd.f32 %v438, %v439
        %v441 = vrot.slane %v440, 2
        %v442 = vadd.f32 %v440, %v441
        %v443 = vrot.slane %v442, 1
        %v444 = vadd.f32 %v442, %v443
        %v445 = vmul.f32 %v444, %v432
        %v446 = vadd.f32 %v445, 1e-05
        %v447 = vrsqrt.pop %v446
        %v448 = vmul.f32 %v447, %v446
        %v449 = vmul.f32 %v448, %v447
        %v450 = vmul.f32 0.5, %v449
        %v451 = vsub.f32 1.5, %v450
        %v452 = vmul.f32 %v447, %v451
        %vm453 = vweird.f32 %v446
        %vm454 = vweird.f32 %v447
        %vm455 = vmor %vm453, %vm454
        %v456 = vsel %vm455, %v447, %v452
        %v457 = vmul.f32 %v307, %v456
        %v458 = vld [vmem:[%s287] sm:$0xff]
        %v459 = vld [vmem:[%s287 + $0x8] sm:$0xff]
        %v460 = vperm.slane %v457, 1
        %v461 = vmul.f32 %v434, %v460
        %v462 = vmul.f32 %v435, %v460
        %v463 = vperm.slane %v307, 2
        %v464 = vadd.f32 %v461, %v463
        %v465 = vadd.f32 %v462, %v463
        %467 = vset.pattern.permute.xlu0 0
        %468 = vperm.xlu0 %467, %v458
        %v469 = vpop.permute.xlu0 %468
        %472 = vset.pattern.permute.xlu0 0
        %473 = vperm.xlu0 %472, %v459
        %v474 = vpop.permute.xlu0 %473
        %v476 = vmul.f32 %v464, %v469
        %v477 = vmul.f32 %v465, %v474
        %478 = vst [vmem:[%s261] sm:$0xff] %v476
        %479 = vst [vmem:[%s261 + $0x8] sm:$0xff] %v477
        %s480 = sand.u32 %s145, 1
        %s481 = sand.u32 %s145, 1
        %s482 = smul.addr %s481, 16
        %s483 = scalar_lea.vmem [#allocation2], %s482
        // Predicated region
        $region37: #{expert_head_forward.1} parent=35 // pred_check
          %p484 = pneg %p155
        $region38: #{expert_head_forward.1} parent=35 // pred_check_branch
          %486 = sbr.rel (%p484) target = $region40
        $region39: #{expert_head_forward.1} parent=35 // pred_region
          %s487 = sadd.s32 %s19, %s20
          %s488 = smul.addr %s487, 8
          %s489 = scalar_lea.vmem %s4, %s488
          // Predicated region
          $region41: #{expert_head_forward.1} parent=39 // pred_check
            _
          $region42: #{expert_head_forward.1} parent=39 // pred_check_branch
            %491 = sbr.rel (0) target = $region44
          $region43: #{expert_head_forward.1} parent=39 // pred_region
            // Predicated region
            $region45: #{expert_head_forward.1} parent=43 // pred_check
              _
            $region46: #{expert_head_forward.1} parent=43 // pred_check_branch
              %493 = sbr.rel (0) target = $region48
            $region47: #{expert_head_forward.1} parent=43 // pred_region
              // Predicated region
              $region60: #{expert_head_forward.1} parent=47 // pred_check
                _
              $region61: #{expert_head_forward.1} parent=47 // pred_check_branch
                %511 = sbr.rel (0) target = $region63
              $region62: #{expert_head_forward.1} parent=47 // pred_region
                loop: start=0, step=1, limit=1
                $region64: #{expert_head_forward.1} parent=62 // loop_pre_header
                  _
                $region65: #{expert_head_forward.1} parent=62 // loop_header
                  %s513 = sphi 0, %s517
                  %p514 = scmp.ge.s32.totalorder %s513, 1
                  %s518 = sphi %s483, %s483
                  %s519 = sphi %s489, %s489
                $region66: #{expert_head_forward.1} parent=62 // loop_header_branch
                  %516 = sbr.rel (%p514) target = $region70
                $region67: #{expert_head_forward.1} parent=62 // loop_body
                  %v520 = vld [vmem:[%s518] sm:$0xff]
                  %521 = vst [vmem:[%s519] sm:$0xff] %v520
                  %v522 = vld [vmem:[%s518 + $0x8] sm:$0xff]
                  %523 = vst [vmem:[%s519 + $0x20] sm:$0xff] %v522
                $region68: #{expert_head_forward.1} parent=62 // loop_footer
                  %s517 = sadd.s32 1, %s513
                $region69: #{expert_head_forward.1} parent=62 // loop_footer_branch
                  %512 = sbr.rel target = $region65
                $region70: #{expert_head_forward.1} parent=62 // loop_exit
                  _
              $region63: #{expert_head_forward.1} parent=47 // pred_fallthru
                _
              // Predicated region
              $region71: #{expert_head_forward.1} parent=47 // pred_check
                _
              $region72: #{expert_head_forward.1} parent=47 // pred_check_branch
                %525 = sbr.rel target = $region74
              $region73: #{expert_head_forward.1} parent=47 // pred_region
                _
              $region74: #{expert_head_forward.1} parent=47 // pred_fallthru
                _
            $region48: #{expert_head_forward.1} parent=43 // pred_fallthru
              _
            // Predicated region
            $region49: #{expert_head_forward.1} parent=43 // pred_check
              _
            $region50: #{expert_head_forward.1} parent=43 // pred_check_branch
              %495 = sbr.rel target = $region52
            $region51: #{expert_head_forward.1} parent=43 // pred_region
              %s497 = ssub.s32 256, 1
              loop: start=0, step=1, limit=1
              $region53: #{expert_head_forward.1} parent=51 // loop_pre_header
                _
              $region54: #{expert_head_forward.1} parent=51 // loop_header
                %s499 = sphi 0, %s503
                %p500 = scmp.ge.s32.totalorder %s499, 1
                %s504 = sphi %s483, %s483
                %s505 = sphi %s489, %s489
              $region55: #{expert_head_forward.1} parent=51 // loop_header_branch
                %502 = sbr.rel (%p500) target = $region59
              $region56: #{expert_head_forward.1} parent=51 // loop_body
                %v506 = vld [vmem:[%s504] sm:%s497]
                %507 = vst [vmem:[%s505] sm:%s497] %v506
                %v508 = vld [vmem:[%s504 + $0x8] sm:%s497]
                %509 = vst [vmem:[%s505 + $0x20] sm:%s497] %v508
              $region57: #{expert_head_forward.1} parent=51 // loop_footer
                %s503 = sadd.s32 1, %s499
              $region58: #{expert_head_forward.1} parent=51 // loop_footer_branch
                %498 = sbr.rel target = $region54
              $region59: #{expert_head_forward.1} parent=51 // loop_exit
                _
            $region52: #{expert_head_forward.1} parent=43 // pred_fallthru
              _
          $region44: #{expert_head_forward.1} parent=39 // pred_fallthru
            _
          %526 = vnop
        $region40: #{expert_head_forward.1} parent=35 // pred_fallthru
          _
      $region36: #{expert_head_forward.1} parent=5 // pred_fallthru
        _
      %p527 = scmp.le.s32.totalorder 2, %s10
      // Predicated region
      $region75: #{expert_head_forward.1} parent=5 // pred_check
        %p528 = pneg %p527
      $region76: #{expert_head_forward.1} parent=5 // pred_check_branch
        %530 = sbr.rel (%p528) target = $region78
      $region77: #{expert_head_forward.1} parent=5 // pred_region
        %s531 = ssub.s32 %s10, 2
        // Predicated region
        $region79: #{expert_head_forward.1} parent=77 // pred_check
          %p532 = pneg %p161
        $region80: #{expert_head_forward.1} parent=77 // pred_check_branch
          %534 = sbr.rel (%p532) target = $region82
        $region81: #{expert_head_forward.1} parent=77 // pred_region
          %s535 = sand.u32 %s146, 1
          %s536 = sand.u32 %s146, 1
          %s537 = smul.addr %s536, 16
          %s538 = scalar_lea.vmem [#allocation2], %s537
        $region82: #{expert_head_forward.1} parent=77 // pred_fallthru
          _
      $region78: #{expert_head_forward.1} parent=5 // pred_fallthru
        _
    $region6: #{expert_head_forward.1} parent=1 // loop_footer
      %s14 = sadd.s32 1, %s10
    $region7: #{expert_head_forward.1} parent=1 // loop_footer_branch
      %9 = sbr.rel target = $region3
    $region8: #{expert_head_forward.1} parent=1 // loop_exit
      _

</llo_original>
